<compile_context>
chip_gen: v7x
topology: tpu7x:2x2x1
jax: 0.10.0
libtpu: 0.0.40
codegen_flags: <defaults>
</compile_context>

<pallas_src>
import jax
import jax.numpy as jnp
from jax.experimental import pallas as pl
from jax.experimental.pallas import tpu as pltpu

# ---- model hyperparameters (small, consistent with the module) ----
BATCH      = 2
N_FEATURES = 16
N_C        = 4
HIDDEN_DIM = 32
J_DIM      = 8
Z_DIM      = 8
DOMAIN     = 5   # unused in forward (kept for parity with __init__)


def _align8(n):
    return (n + 7) & ~7


# ---- single packed parameter slab (ONE DMA); every slice start is 8-sublane aligned ----
R_W1H   = 0                                    # rows [  0, 16) : w1h              [F, H]
R_W2H   = _align8(R_W1H + N_FEATURES)          # rows [ 16, 48) : w2h  (cols 0:J)  [H, H]
R_W1GT  = _align8(R_W2H + HIDDEN_DIM)          # rows [ 48, 80) : w1g^T (cols 0:Z) [H, Z]
R_W2GT  = _align8(R_W1GT + HIDDEN_DIM)         # rows [ 80,112) : reordered w2g^T  [C*J, H]
R_B1H   = _align8(R_W2GT + N_C * J_DIM)        # row   112      : b1h              [1, H]
R_B2H   = R_B1H + 8                            # row   120      : b2h  (cols 0:J)  [1, H]
R_B1GC  = R_B2H + 8                            # rows [128,160) : b1g as a column  [H, 1]  (lane 0)
R_B2GC  = _align8(R_B1GC + HIDDEN_DIM)         # rows [160,192) : b2g (reord) col  [C*J,1] (lane 0)
SLAB_ROWS = _align8(R_B2GC + N_C * J_DIM)      # 192


# ----------------------------------------------------------------------------
# Fused kernel: one grid step == one full forward pass for one (x, z) example.
# ----------------------------------------------------------------------------
def fused_obs_classifier_kernel(x_ref, zt_ref, w_ref, o_ref):
    F, H, J, C, Z = N_FEATURES, HIDDEN_DIM, J_DIM, N_C, Z_DIM

    x  = x_ref[...]                                     # [B, F]
    zt = zt_ref[...]                                    # [Z, B]

    # --- static views into the VMEM-resident parameter slab ---
    w1h  = w_ref[R_W1H:R_W1H + F, :]                    # [F, H]
    w2h  = w_ref[R_W2H:R_W2H + H, :]                    # [H, H]   (cols >= J are zero)
    w1gt = w_ref[R_W1GT:R_W1GT + H, 0:Z]                # [H, Z]
    w2gt = w_ref[R_W2GT:R_W2GT + C * J, :]              # [C*J, H]
    b1h  = w_ref[R_B1H:R_B1H + 1, :]                    # [1, H]
    b2h  = w_ref[R_B2H:R_B2H + 1, :]                    # [1, H]   (cols >= J are zero)
    b1gc = w_ref[R_B1GC:R_B1GC + H, :][:, 0:1]          # [H, 1]
    b2gc = w_ref[R_B2GC:R_B2GC + C * J, :][:, 0:1]      # [C*J, 1]

    # --- h branch: Linear -> ReLU -> Linear (row-major, batch on sublanes) ---
    ah    = jnp.maximum(jnp.dot(x, w1h, preferred_element_type=jnp.float32) + b1h, 0.0)  # [B, H]
    hfull = jnp.dot(ah, w2h, preferred_element_type=jnp.float32) + b2h                   # [B, H]
    h     = hfull[:, 0:J]                                                                # [B, J]

    # --- g branch, computed transposed (batch on lanes): no reshape/transpose needed ---
    # agt[k, b] == relu(z @ w1g + b1g)[b, k]
    agt = jnp.maximum(jnp.dot(w1gt, zt, preferred_element_type=jnp.float32) + b1gc, 0.0)  # [H, B]
    # g[c*J + j, b] == tanh(z-branch)[b, j*C + c] == g.view(B, J, C)[b, j, c]
    g = jnp.tanh(jnp.dot(w2gt, agt, preferred_element_type=jnp.float32) + b2gc)           # [C*J, B]

    # --- scores as ONE matmul: rhs [J, C*B] with column index c*B + b ---
    gbig = jnp.concatenate([g[c * J:(c + 1) * J, :] for c in range(C)], axis=1)           # [J, C*B]
    s = jnp.dot(h, gbig, preferred_element_type=jnp.float32)                              # [B, C*B]
    # s[i, c*B + b] == torch scores[b, i, c]

    # --- log_softmax over the h-batch axis (torch dim=1) ---
    m   = jnp.max(s, axis=0, keepdims=True)
    e   = s - m
    lse = jnp.log(jnp.sum(jnp.exp(e), axis=0, keepdims=True))
    o_ref[...] = e - lse                                                                  # [B, C*B]


# ----------------------------------------------------------------------------
# One-time parameter packing (kept OUT of the per-call hot path).
# ----------------------------------------------------------------------------
def pack_params(p):
    F, H, J, C, Z = N_FEATURES, HIDDEN_DIM, J_DIM, N_C, Z_DIM

    wslab = jnp.zeros((SLAB_ROWS, H), jnp.float32)
    wslab = wslab.at[R_W1H:R_W1H + F, :].set(p["w1h"])
    wslab = wslab.at[R_W2H:R_W2H + H, 0:J].set(p["w2h"])        # cols >= J stay zero
    wslab = wslab.at[R_W1GT:R_W1GT + H, 0:Z].set(p["w1g"].T)    # cols >= Z stay zero
    # reorder w2g columns (j*C + c) -> rows (c*J + j), transposed to [C*J, H]
    w2gt = jnp.transpose(p["w2g"].reshape(H, J, C), (2, 1, 0)).reshape(C * J, H)
    wslab = wslab.at[R_W2GT:R_W2GT + C * J, :].set(w2gt)
    wslab = wslab.at[R_B1H, :].set(p["b1h"][0])
    wslab = wslab.at[R_B2H, 0:J].set(p["b2h"][0])               # cols >= J stay zero
    wslab = wslab.at[R_B1GC:R_B1GC + H, 0].set(p["b1g"][0])     # b1g as a column (lane 0)
    b2g_r = jnp.transpose(p["b2g"][0].reshape(J, C)).reshape(C * J)
    wslab = wslab.at[R_B2GC:R_B2GC + C * J, 0].set(b2g_r)       # reordered b2g column

    return dict(wslab=wslab)


# ----------------------------------------------------------------------------
# Wrapper: one pallas_call for N stacked examples (grid over the example axis),
# weights VMEM-resident via constant index_map, example axis "parallel" (v7x 2 TCs).
# ----------------------------------------------------------------------------
@jax.jit
def observation_classifier_forward(x, z, packed):
    single = (x.ndim == 2)              # accept [B,F]/[B,Z] or stacked [N,B,F]/[N,B,Z]
    if single:
        x = x[None]
        z = z[None]
    N, B = x.shape[0], x.shape[1]
    C = N_C

    zt = jnp.swapaxes(z, 1, 2)          # ONE op for the whole stack -> [N, Z, B]

    out = pl.pallas_call(
        fused_obs_classifier_kernel,
        grid=(N,),
        in_specs=[
            pl.BlockSpec((None, B, N_FEATURES), lambda n: (n, 0, 0)),
            pl.BlockSpec((None, Z_DIM, B), lambda n: (n, 0, 0)),
            # constant block index -> parameter slab DMA'd once, stays in VMEM
            pl.BlockSpec((SLAB_ROWS, HIDDEN_DIM), lambda n: (0, 0)),
        ],
        out_specs=pl.BlockSpec((None, B, C * B), lambda n: (n, 0, 0)),
        out_shape=jax.ShapeDtypeStruct((N, B, C * B), jnp.float32),
        compiler_params=pltpu.CompilerParams(dimension_semantics=("parallel",)),
    )(x, zt, packed["wslab"])

    # out[n, i, c*B + b] == f_n[b, i, c]; ONE stacked permute for all N examples.
    f = jnp.transpose(out.reshape(N, B, C, B), (0, 3, 1, 2)).reshape(N, B * B, C)
    return f[0] if single else f


# ----------------------------------------------------------------------------
# Deterministic parameter initialization (PyTorch-Linear-like uniform init)
# ----------------------------------------------------------------------------
def init_params(key):
    def linear(key, fan_in, fan_out):
        k1, k2 = jax.random.split(key)
        bound = 1.0 / jnp.sqrt(fan_in)
        w = jax.random.uniform(k1, (fan_in, fan_out), jnp.float32, -bound, bound)
        b = jax.random.uniform(k2, (1, fan_out), jnp.float32, -bound, bound)
        return w, b

    keys = jax.random.split(key, 4)
    w1h, b1h = linear(keys[0], N_FEATURES, HIDDEN_DIM)
    w2h, b2h = linear(keys[1], HIDDEN_DIM, J_DIM)
    w1g, b1g = linear(keys[2], Z_DIM, HIDDEN_DIM)
    w2g, b2g = linear(keys[3], HIDDEN_DIM, J_DIM * N_C)
    return dict(w1h=w1h, b1h=b1h, w2h=w2h, b2h=b2h,
                w1g=w1g, b1g=b1g, w2g=w2g, b2g=b2g)


# Pure-JAX reference (correctness guard)
def ref_forward(x, z, p):
    h = jnp.maximum(x @ p["w1h"] + p["b1h"], 0.0) @ p["w2h"] + p["b2h"]
    g = jnp.tanh(jnp.maximum(z @ p["w1g"] + p["b1g"], 0.0) @ p["w2g"] + p["b2g"])
    g3 = g.reshape(x.shape[0], J_DIM, N_C)
    scores = jnp.einsum("ij,bjc->bic", h, g3)          # == torch.matmul(h, g)
    f = jax.nn.log_softmax(scores, axis=1)
    return f.reshape(-1, N_C)


if __name__ == "__main__":
    key = jax.random.PRNGKey(0)
    kp, kx1, kz1, kxn, kzn = jax.random.split(key, 5)
    params = init_params(kp)
    packed = pack_params(params)          # one-time packing, not in the hot path

    # --- single example (module-shaped call) ---
    x1 = jax.random.normal(kx1, (BATCH, N_FEATURES), jnp.float32)
    z1 = jax.random.normal(kz1, (BATCH, Z_DIM), jnp.float32)
    out1 = jax.block_until_ready(observation_classifier_forward(x1, z1, packed))
    ref1 = ref_forward(x1, z1, params)
    assert out1.shape == (BATCH * BATCH, N_C)
    assert jnp.allclose(out1, ref1, atol=1e-4, rtol=1e-4), (out1, ref1)

    # --- N independent (x, z) examples in ONE pallas_call (grid-amortized launch) ---
    N = 16
    xN = jax.random.normal(kxn, (N, BATCH, N_FEATURES), jnp.float32)
    zN = jax.random.normal(kzn, (N, BATCH, Z_DIM), jnp.float32)
    outN = jax.block_until_ready(observation_classifier_forward(xN, zN, packed))
    refN = jax.vmap(lambda a, b: ref_forward(a, b, params))(xN, zN)
    assert outN.shape == (N, BATCH * BATCH, N_C)
    assert jnp.allclose(outN, refN, atol=1e-4, rtol=1e-4), (outN, refN)

    print("KERNEL_OK")
</pallas_src>

<mosaic_0001>
module attributes {stable_mosaic.version = 11 : i64} {
  func.func @fused_obs_classifier_kernel(%arg0: i32, %arg1: memref<1x2x16xf32, #tpu.memory_space<vmem>>, %arg2: memref<1x8x2xf32, #tpu.memory_space<vmem>>, %arg3: memref<192x32xf32, #tpu.memory_space<vmem>>, %arg4: memref<1x2x8xf32, #tpu.memory_space<vmem>>) attributes {dimension_semantics = [#tpu.dimension_semantics<parallel>], iteration_bounds = array<i64: 1>, scalar_prefetch = 0 : i64, scratch_operands = 0 : i64, tpu.core_type = #tpu.core_type<tc>, window_params = [{transform_indices = @transform_0, window_bounds = array<i64: 1, 2, 16>}, {transform_indices = @transform_1, window_bounds = array<i64: 1, 8, 2>}, {pipeline_mode = #tpu.pipeline_mode<synchronous>, transform_indices = @transform_2, window_bounds = array<i64: 192, 32>}, {transform_indices = @transform_3, window_bounds = array<i64: 1, 2, 8>}]} {
    %c0 = arith.constant 0 : index
    %c0_0 = arith.constant 0 : index
    %c0_1 = arith.constant 0 : index
    %0 = vector.load %arg1[%c0, %c0_0, %c0_1] : memref<1x2x16xf32, #tpu.memory_space<vmem>>, vector<1x2x16xf32>
    %1 = vector.shape_cast %0 : vector<1x2x16xf32> to vector<2x16xf32>
    %c0_2 = arith.constant 0 : index
    %c0_3 = arith.constant 0 : index
    %c0_4 = arith.constant 0 : index
    %2 = vector.load %arg2[%c0_2, %c0_3, %c0_4] : memref<1x8x2xf32, #tpu.memory_space<vmem>>, vector<1x8x2xf32>
    %3 = vector.shape_cast %2 : vector<1x8x2xf32> to vector<8x2xf32>
    %c0_5 = arith.constant 0 : index
    %c0_6 = arith.constant 0 : index
    %4 = vector.load %arg3[%c0_5, %c0_6] : memref<192x32xf32, #tpu.memory_space<vmem>>, vector<16x32xf32>
    %c16 = arith.constant 16 : index
    %c0_7 = arith.constant 0 : index
    %5 = vector.load %arg3[%c16, %c0_7] : memref<192x32xf32, #tpu.memory_space<vmem>>, vector<32x32xf32>
    %c48 = arith.constant 48 : index
    %c0_8 = arith.constant 0 : index
    %6 = vector.load %arg3[%c48, %c0_8] : memref<192x32xf32, #tpu.memory_space<vmem>>, vector<32x8xf32>
    %c80 = arith.constant 80 : index
    %c0_9 = arith.constant 0 : index
    %7 = vector.load %arg3[%c80, %c0_9] : memref<192x32xf32, #tpu.memory_space<vmem>>, vector<32x32xf32>
    %c112 = arith.constant 112 : index
    %c0_10 = arith.constant 0 : index
    %8 = vector.load %arg3[%c112, %c0_10] : memref<192x32xf32, #tpu.memory_space<vmem>>, vector<1x32xf32>
    %c120 = arith.constant 120 : index
    %c0_11 = arith.constant 0 : index
    %9 = vector.load %arg3[%c120, %c0_11] : memref<192x32xf32, #tpu.memory_space<vmem>>, vector<1x32xf32>
    %c128 = arith.constant 128 : index
    %c0_12 = arith.constant 0 : index
    %10 = vector.load %arg3[%c128, %c0_12] : memref<192x32xf32, #tpu.memory_space<vmem>>, vector<32x32xf32>
    %11 = vector.extract_strided_slice %10 {offsets = [0, 0], sizes = [32, 1], strides = [1, 1]} : vector<32x32xf32> to vector<32x1xf32>
    %c160 = arith.constant 160 : index
    %c0_13 = arith.constant 0 : index
    %12 = vector.load %arg3[%c160, %c0_13] : memref<192x32xf32, #tpu.memory_space<vmem>>, vector<32x32xf32>
    %13 = vector.extract_strided_slice %12 {offsets = [0, 0], sizes = [32, 1], strides = [1, 1]} : vector<32x32xf32> to vector<32x1xf32>
    %cst = arith.constant dense<0.000000e+00> : vector<2x32xf32>
    %14 = tpu.matmul %1, %4, %cst {dimension_numbers = #tpu.dot_dimension_numbers<[1], [0], [0], [1], [0, 0, 1, 1], [], []>} : vector<2x16xf32>, vector<16x32xf32>, vector<2x32xf32> -> vector<2x32xf32>
    %15 = vector.broadcast %8 : vector<1x32xf32> to vector<2x32xf32>
    %16 = arith.addf %14, %15 : vector<2x32xf32>
    %cst_14 = arith.constant 0.000000e+00 : f32
    %17 = vector.broadcast %cst_14 : f32 to vector<2x32xf32>
    %18 = arith.maximumf %16, %17 : vector<2x32xf32>
    %cst_15 = arith.constant dense<0.000000e+00> : vector<2x32xf32>
    %19 = tpu.matmul %18, %5, %cst_15 {dimension_numbers = #tpu.dot_dimension_numbers<[1], [0], [0], [1], [0, 0, 1, 1], [], []>} : vector<2x32xf32>, vector<32x32xf32>, vector<2x32xf32> -> vector<2x32xf32>
    %20 = vector.broadcast %9 : vector<1x32xf32> to vector<2x32xf32>
    %21 = arith.addf %19, %20 : vector<2x32xf32>
    %22 = vector.extract_strided_slice %21 {offsets = [0, 0], sizes = [2, 8], strides = [1, 1]} : vector<2x32xf32> to vector<2x8xf32>
    %cst_16 = arith.constant dense<0.000000e+00> : vector<32x2xf32>
    %23 = tpu.matmul %6, %3, %cst_16 {dimension_numbers = #tpu.dot_dimension_numbers<[1], [0], [0], [1], [0, 0, 1, 1], [], []>} : vector<32x8xf32>, vector<8x2xf32>, vector<32x2xf32> -> vector<32x2xf32>
    %24 = vector.broadcast %11 : vector<32x1xf32> to vector<32x2xf32>
    %25 = arith.addf %23, %24 : vector<32x2xf32>
    %cst_17 = arith.constant 0.000000e+00 : f32
    %26 = vector.broadcast %cst_17 : f32 to vector<32x2xf32>
    %27 = arith.maximumf %25, %26 : vector<32x2xf32>
    %cst_18 = arith.constant dense<0.000000e+00> : vector<32x2xf32>
    %28 = tpu.matmul %7, %27, %cst_18 {dimension_numbers = #tpu.dot_dimension_numbers<[1], [0], [0], [1], [0, 0, 1, 1], [], []>} : vector<32x32xf32>, vector<32x2xf32>, vector<32x2xf32> -> vector<32x2xf32>
    %29 = vector.broadcast %13 : vector<32x1xf32> to vector<32x2xf32>
    %30 = arith.addf %28, %29 : vector<32x2xf32>
    %31 = math.tanh %30 : vector<32x2xf32>
    %32 = vector.extract_strided_slice %31 {offsets = [0, 0], sizes = [8, 2], strides = [1, 1]} : vector<32x2xf32> to vector<8x2xf32>
    %33 = vector.extract_strided_slice %31 {offsets = [8, 0], sizes = [8, 2], strides = [1, 1]} : vector<32x2xf32> to vector<8x2xf32>
    %34 = vector.extract_strided_slice %31 {offsets = [16, 0], sizes = [8, 2], strides = [1, 1]} : vector<32x2xf32> to vector<8x2xf32>
    %35 = vector.extract_strided_slice %31 {offsets = [24, 0], sizes = [8, 2], strides = [1, 1]} : vector<32x2xf32> to vector<8x2xf32>
    %36 = tpu.concatenate %32, %33, %34, %35 in 1 : vector<8x2xf32>, vector<8x2xf32>, vector<8x2xf32>, vector<8x2xf32> -> vector<8x8xf32>
    %cst_19 = arith.constant dense<0.000000e+00> : vector<2x8xf32>
    %37 = tpu.matmul %22, %36, %cst_19 {dimension_numbers = #tpu.dot_dimension_numbers<[1], [0], [0], [1], [0, 0, 1, 1], [], []>} : vector<2x8xf32>, vector<8x8xf32>, vector<2x8xf32> -> vector<2x8xf32>
    %cst_20 = arith.constant dense<0xFF800000> : vector<8xf32>
    %38 = vector.multi_reduction <maximumf>, %37, %cst_20 [0] : vector<2x8xf32> to vector<8xf32>
    %39 = vector.shape_cast %38 : vector<8xf32> to vector<1x8xf32>
    %40 = vector.broadcast %39 : vector<1x8xf32> to vector<2x8xf32>
    %41 = arith.subf %37, %40 : vector<2x8xf32>
    %42 = math.exp %41 : vector<2x8xf32>
    %cst_21 = arith.constant dense<0.000000e+00> : vector<8xf32>
    %43 = vector.multi_reduction <add>, %42, %cst_21 [0] : vector<2x8xf32> to vector<8xf32>
    %44 = vector.shape_cast %43 : vector<8xf32> to vector<1x8xf32>
    %45 = math.log %44 : vector<1x8xf32>
    %46 = vector.broadcast %45 : vector<1x8xf32> to vector<2x8xf32>
    %47 = arith.subf %41, %46 : vector<2x8xf32>
    %c0_22 = arith.constant 0 : index
    %c0_23 = arith.constant 0 : index
    %c0_24 = arith.constant 0 : index
    %48 = vector.load %arg4[%c0_22, %c0_23, %c0_24] : memref<1x2x8xf32, #tpu.memory_space<vmem>>, vector<1x2x8xf32>
    %49 = vector.shape_cast %48 : vector<1x2x8xf32> to vector<2x8xf32>
    %50 = vector.shape_cast %47 : vector<2x8xf32> to vector<1x2x8xf32>
    tpu.vector_store %arg4[%c0_22, %c0_23, %c0_24], %50 {strides = array<i32>} : memref<1x2x8xf32, #tpu.memory_space<vmem>>, vector<1x2x8xf32>,
    return
  }
  func.func @transform_0(%arg0: i32) -> (i32, i32, i32) {
    %c0_i32 = arith.constant 0 : i32
    %c0_i32_0 = arith.constant 0 : i32
    %c0_i32_1 = arith.constant 0 : i32
    return %arg0, %c0_i32, %c0_i32_0 : i32, i32, i32
  }
  func.func @transform_1(%arg0: i32) -> (i32, i32, i32) {
    %c0_i32 = arith.constant 0 : i32
    %c0_i32_0 = arith.constant 0 : i32
    %c0_i32_1 = arith.constant 0 : i32
    return %arg0, %c0_i32, %c0_i32_0 : i32, i32, i32
  }
  func.func @transform_2(%arg0: i32) -> (i32, i32) {
    %c0_i32 = arith.constant 0 : i32
    %c0_i32_0 = arith.constant 0 : i32
    %c0_i32_1 = arith.constant 0 : i32
    return %c0_i32, %c0_i32_0 : i32, i32
  }
  func.func @transform_3(%arg0: i32) -> (i32, i32, i32) {
    %c0_i32 = arith.constant 0 : i32
    %c0_i32_0 = arith.constant 0 : i32
    %c0_i32_1 = arith.constant 0 : i32
    return %arg0, %c0_i32, %c0_i32_0 : i32, i32, i32
  }
}

</mosaic_0001>

<llo_original>
// kernel: observation_classifier_forward.1
$region0: #{observation_classifier_forward.1}
  #allocation0 [shape = 'u32[]', space=smem, size = 0x4, offset = 0x4, fixed_abs, tag = 'smem constant byte address 0x4 - core index']
  #allocation1 [shape = 'u32[144,128]{1,0:T(1,128)}', space=vmem, size = 0x12000, scoped, tag = 'internal scratch']
  %s0 = inlined_call_operand.vmem [shape: f32[1,2,16], index: 0, kind: input, shape index: {}]
  %s1 = inlined_call_operand.vmem [shape: f32[1,8,2], index: 1, kind: input, shape index: {}]
  %s2 = inlined_call_operand.vmem [shape: f32[192,32], index: 2, kind: input, shape index: {}]
  %s3 = inlined_call_operand.vmem [shape: f32[1,2,8], index: 3, kind: output, shape index: {}]
  %s4 = sld [smem:[#allocation0]]
  $region22: #{observation_classifier_forward.1} parent=0
    _
  %s6 = ssub.s32 1, %s4
  %s7 = scalar_select 0, %s6, %s4
  // Predicated region
  $region2: #{observation_classifier_forward.1} parent=0 // pred_check
    _
  $region3: #{observation_classifier_forward.1} parent=0 // pred_check_branch
    %9 = sbr.rel (0) target = $region5
  $region4: #{observation_classifier_forward.1} parent=0 // pred_region
    _
  $region5: #{observation_classifier_forward.1} parent=0 // pred_fallthru
    _
  // Predicated region
  $region6: #{observation_classifier_forward.1} parent=0 // pred_check
    _
  $region7: #{observation_classifier_forward.1} parent=0 // pred_check_branch
    %11 = sbr.rel (0) target = $region9
  $region8: #{observation_classifier_forward.1} parent=0 // pred_region
    _
  $region9: #{observation_classifier_forward.1} parent=0 // pred_fallthru
    _
  // Predicated region
  $region10: #{observation_classifier_forward.1} parent=0 // pred_check
    _
  $region11: #{observation_classifier_forward.1} parent=0 // pred_check_branch
    %13 = sbr.rel (0) target = $region13
  $region12: #{observation_classifier_forward.1} parent=0 // pred_region
    _
  $region13: #{observation_classifier_forward.1} parent=0 // pred_fallthru
    _
  %v14 = vld [vmem:[%s0] sm:$0x3]
  %v15 = vld [vmem:[%s1] sm:$0xff]
  %v16 = vld [vmem:[%s2] sm:$0xff]
  %v17 = vld [vmem:[%s2 + $0x8] sm:$0xff]
  %v18 = vld [vmem:[%s2 + $0x10] sm:$0xff]
  %v19 = vld [vmem:[%s2 + $0x18] sm:$0xff]
  %v20 = vld [vmem:[%s2 + $0x20] sm:$0xff]
  %v21 = vld [vmem:[%s2 + $0x28] sm:$0xff]
  %v22 = vld [vmem:[%s2 + $0x30] sm:$0xff]
  %v23 = vld [vmem:[%s2 + $0x38] sm:$0xff]
  %v24 = vld [vmem:[%s2 + $0x40] sm:$0xff]
  %v25 = vld [vmem:[%s2 + $0x48] sm:$0xff]
  %v26 = vld [vmem:[%s2 + $0x50] sm:$0xff]
  %v27 = vld [vmem:[%s2 + $0x58] sm:$0xff]
  %v28 = vld [vmem:[%s2 + $0x60] sm:$0xff]
  %v29 = vld [vmem:[%s2 + $0x68] sm:$0xff]
  %v30 = vld [vmem:[%s2 + $0x70] sm:$0x1]
  %v31 = vld [vmem:[%s2 + $0x78] sm:$0x1]
  %v32 = vld [vmem:[%s2 + $0x80] sm:$0xff]
  %v33 = vld [vmem:[%s2 + $0x88] sm:$0xff]
  %v34 = vld [vmem:[%s2 + $0x90] sm:$0xff]
  %v35 = vld [vmem:[%s2 + $0x98] sm:$0xff]
  %v36 = vld [vmem:[%s2 + $0xa0] sm:$0xff]
  %v37 = vld [vmem:[%s2 + $0xa8] sm:$0xff]
  %v38 = vld [vmem:[%s2 + $0xb0] sm:$0xff]
  %v39 = vld [vmem:[%s2 + $0xb8] sm:$0xff]
  %v40 = vlaneseq
  %v41 = vshrl.u32 %v40, 7
  %v42 = vsub.s32 0, %v41
  %v43 = vrot.slane %v30, %v42
  %vm44 = vcmask 130048
  %v46 = vsel %vm44, %v14, 0
  %48 = vmatprep.subr.mxu0 0.0
  %49 = vmatpush1.msra.mxu0 %v16
  %50 = vmatprep.subr.mxu0 0.0
  %51 = vmatpush1.msra.mxu0 %v17
  %52 = vmatprep.subr.mxu0 0.0
  %53 = vmatpush1.msra.mxu0 0.0
  %54 = vmatprep.subr.mxu0 0.0
  %55 = vmatpush1.msra.mxu0 0.0
  %56 = vmatprep.subr.mxu0 0.0
  %57 = vmatpush1.msra.mxu0 0.0
  %58 = vmatprep.subr.mxu0 0.0
  %59 = vmatpush1.msra.mxu0 0.0
  %60 = vmatprep.subr.mxu0 0.0
  %61 = vmatpush1.msra.mxu0 0.0
  %62 = vmatprep.subr.mxu0 0.0
  %63 = vmatpush1.msra.mxu0 0.0
  %64 = vmatprep.subr.mxu0 0.0
  %65 = vmatpush1.msra.mxu0 0.0
  %66 = vmatprep.subr.mxu0 0.0
  %67 = vmatpush1.msra.mxu0 0.0
  %68 = vmatprep.subr.mxu0 0.0
  %69 = vmatpush1.msra.mxu0 0.0
  %70 = vmatprep.subr.mxu0 0.0
  %71 = vmatpush1.msra.mxu0 0.0
  %72 = vmatprep.subr.mxu0 0.0
  %73 = vmatpush1.msra.mxu0 0.0
  %74 = vmatprep.subr.mxu0 0.0
  %75 = vmatpush1.msra.mxu0 0.0
  %76 = vmatprep.subr.mxu0 0.0
  %77 = vmatpush1.msra.mxu0 0.0
  %78 = vmatprep.subr.mxu0 0.0
  %79 = vmatpush1.msra.mxu0 0.0
  %80 = vmatprep.subr.mxu0 0.0
  %81 = vmatpush1.msra.mxu0 0.0
  %82 = vmatprep.subr.mxu0 0.0
  %83 = vmatpush1.msra.mxu0 0.0
  %84 = vmatprep.subr.mxu0 0.0
  %85 = vmatpush1.msra.mxu0 0.0
  %86 = vmatprep.subr.mxu0 0.0
  %87 = vmatpush1.msra.mxu0 0.0
  %88 = vmatprep.subr.mxu0 0.0
  %89 = vmatpush1.msra.mxu0 0.0
  %90 = vmatprep.subr.mxu0 0.0
  %91 = vmatpush1.msra.mxu0 0.0
  %92 = vmatprep.subr.mxu0 0.0
  %93 = vmatpush1.msra.mxu0 0.0
  %94 = vmatprep.subr.mxu0 0.0
  %95 = vmatpush1.msra.mxu0 0.0
  %96 = vmatprep.subr.mxu0 0.0
  %97 = vmatpush1.msra.mxu0 0.0
  %98 = vmatprep.subr.mxu0 0.0
  %99 = vmatpush1.msra.mxu0 0.0
  %100 = vmatprep.subr.mxu0 0.0
  %101 = vmatpush1.msra.mxu0 0.0
  %102 = vmatprep.subr.mxu0 0.0
  %103 = vmatpush1.msra.mxu0 0.0
  %104 = vmatprep.subr.mxu0 0.0
  %105 = vmatpush1.msra.mxu0 0.0
  %106 = vmatprep.subr.mxu0 0.0
  %107 = vmatpush1.msra.mxu0 0.0
  %108 = vmatprep.subr.mxu0 0.0
  %109 = vmatpush1.msra.mxu0 0.0
  %110 = vmatprep.subr.mxu0 0.0
  %111 = vmatpush1.msra.mxu0 0.0
  %112 = vmatprep.mubr.f32.mxu0 0.0
  %113 = vmatmul.mubr.f32.gmra.mrb[0].mxu0 %v46
  %v114 = vpop.f32.mrb[0].mxu0
  %v115 = vadd.f32 %v43, %v114
  %v116 = vpop.f32.mrb[0].mxu0
  %117 = vdwg.mxu0
  %v118 = vmax.f32 %v115, 0.0
  %v119 = vlaneseq
  %v120 = vshrl.u32 %v119, 7
  %v121 = vsub.s32 0, %v120
  %v122 = vrot.slane %v31, %v121
  %vm123 = vcmask 261120
  %v125 = vsel %vm123, %v118, 0
  %127 = vmatprep.subr.mxu0 0.0
  %128 = vmatpush1.msra.mxu0 %v18
  %129 = vmatprep.subr.mxu0 0.0
  %130 = vmatpush1.msra.mxu0 %v19
  %131 = vmatprep.subr.mxu0 0.0
  %132 = vmatpush1.msra.mxu0 %v20
  %133 = vmatprep.subr.mxu0 0.0
  %134 = vmatpush1.msra.mxu0 %v21
  %135 = vmatprep.subr.mxu0 0.0
  %136 = vmatpush1.msra.mxu0 0.0
  %137 = vmatprep.subr.mxu0 0.0
  %138 = vmatpush1.msra.mxu0 0.0
  %139 = vmatprep.subr.mxu0 0.0
  %140 = vmatpush1.msra.mxu0 0.0
  %141 = vmatprep.subr.mxu0 0.0
  %142 = vmatpush1.msra.mxu0 0.0
  %143 = vmatprep.subr.mxu0 0.0
  %144 = vmatpush1.msra.mxu0 0.0
  %145 = vmatprep.subr.mxu0 0.0
  %146 = vmatpush1.msra.mxu0 0.0
  %147 = vmatprep.subr.mxu0 0.0
  %148 = vmatpush1.msra.mxu0 0.0
  %149 = vmatprep.subr.mxu0 0.0
  %150 = vmatpush1.msra.mxu0 0.0
  %151 = vmatprep.subr.mxu0 0.0
  %152 = vmatpush1.msra.mxu0 0.0
  %153 = vmatprep.subr.mxu0 0.0
  %154 = vmatpush1.msra.mxu0 0.0
  %155 = vmatprep.subr.mxu0 0.0
  %156 = vmatpush1.msra.mxu0 0.0
  %157 = vmatprep.subr.mxu0 0.0
  %158 = vmatpush1.msra.mxu0 0.0
  %159 = vmatprep.subr.mxu0 0.0
  %160 = vmatpush1.msra.mxu0 0.0
  %161 = vmatprep.subr.mxu0 0.0
  %162 = vmatpush1.msra.mxu0 0.0
  %163 = vmatprep.subr.mxu0 0.0
  %164 = vmatpush1.msra.mxu0 0.0
  %165 = vmatprep.subr.mxu0 0.0
  %166 = vmatpush1.msra.mxu0 0.0
  %167 = vmatprep.subr.mxu0 0.0
  %168 = vmatpush1.msra.mxu0 0.0
  %169 = vmatprep.subr.mxu0 0.0
  %170 = vmatpush1.msra.mxu0 0.0
  %171 = vmatprep.subr.mxu0 0.0
  %172 = vmatpush1.msra.mxu0 0.0
  %173 = vmatprep.subr.mxu0 0.0
  %174 = vmatpush1.msra.mxu0 0.0
  %175 = vmatprep.subr.mxu0 0.0
  %176 = vmatpush1.msra.mxu0 0.0
  %177 = vmatprep.subr.mxu0 0.0
  %178 = vmatpush1.msra.mxu0 0.0
  %179 = vmatprep.subr.mxu0 0.0
  %180 = vmatpush1.msra.mxu0 0.0
  %181 = vmatprep.subr.mxu0 0.0
  %182 = vmatpush1.msra.mxu0 0.0
  %183 = vmatprep.subr.mxu0 0.0
  %184 = vmatpush1.msra.mxu0 0.0
  %185 = vmatprep.subr.mxu0 0.0
  %186 = vmatpush1.msra.mxu0 0.0
  %187 = vmatprep.subr.mxu0 0.0
  %188 = vmatpush1.msra.mxu0 0.0
  %189 = vmatprep.subr.mxu0 0.0
  %190 = vmatpush1.msra.mxu0 0.0
  %191 = vmatprep.mubr.f32.mxu0 0.0
  %192 = vmatmul.mubr.f32.gmra.mrb[0].mxu0 %v125
  %v193 = vpop.f32.mrb[0].mxu0
  %v194 = vadd.f32 %v122, %v193
  %v195 = vpop.f32.mrb[0].mxu0
  %196 = vdwg.mxu0
  %198 = vset.pattern.permute.xlu0 0
  %199 = vperm.xlu0 %198, %v32
  %v200 = vpop.permute.xlu0 %199
  %203 = vset.pattern.permute.xlu0 0
  %204 = vperm.xlu0 %203, %v33
  %v205 = vpop.permute.xlu0 %204
  %208 = vset.pattern.permute.xlu0 0
  %209 = vperm.xlu0 %208, %v34
  %v210 = vpop.permute.xlu0 %209
  %213 = vset.pattern.permute.xlu0 0
  %214 = vperm.xlu0 %213, %v35
  %v215 = vpop.permute.xlu0 %214
  %vm217 = vcmask 64512
  %v219 = vsel %vm217, %v22, 0
  %v222 = vsel %vm217, %v23, 0
  %v225 = vsel %vm217, %v24, 0
  %v228 = vsel %vm217, %v25, 0
  %230 = vmatprep.subr.mxu0 0.0
  %231 = vmatpush1.msra.mxu0 %v15
  %232 = vmatprep.subr.mxu0 0.0
  %233 = vmatpush1.msra.mxu0 0.0
  %234 = vmatprep.subr.mxu0 0.0
  %235 = vmatpush1.msra.mxu0 0.0
  %236 = vmatprep.subr.mxu0 0.0
  %237 = vmatpush1.msra.mxu0 0.0
  %238 = vmatprep.subr.mxu0 0.0
  %239 = vmatpush1.msra.mxu0 0.0
  %240 = vmatprep.subr.mxu0 0.0
  %241 = vmatpush1.msra.mxu0 0.0
  %242 = vmatprep.subr.mxu0 0.0
  %243 = vmatpush1.msra.mxu0 0.0
  %244 = vmatprep.subr.mxu0 0.0
  %245 = vmatpush1.msra.mxu0 0.0
  %246 = vmatprep.subr.mxu0 0.0
  %247 = vmatpush1.msra.mxu0 0.0
  %248 = vmatprep.subr.mxu0 0.0
  %249 = vmatpush1.msra.mxu0 0.0
  %250 = vmatprep.subr.mxu0 0.0
  %251 = vmatpush1.msra.mxu0 0.0
  %252 = vmatprep.subr.mxu0 0.0
  %253 = vmatpush1.msra.mxu0 0.0
  %254 = vmatprep.subr.mxu0 0.0
  %255 = vmatpush1.msra.mxu0 0.0
  %256 = vmatprep.subr.mxu0 0.0
  %257 = vmatpush1.msra.mxu0 0.0
  %258 = vmatprep.subr.mxu0 0.0
  %259 = vmatpush1.msra.mxu0 0.0
  %260 = vmatprep.subr.mxu0 0.0
  %261 = vmatpush1.msra.mxu0 0.0
  %262 = vmatprep.subr.mxu0 0.0
  %263 = vmatpush1.msra.mxu0 0.0
  %264 = vmatprep.subr.mxu0 0.0
  %265 = vmatpush1.msra.mxu0 0.0
  %266 = vmatprep.subr.mxu0 0.0
  %267 = vmatpush1.msra.mxu0 0.0
  %268 = vmatprep.subr.mxu0 0.0
  %269 = vmatpush1.msra.mxu0 0.0
  %270 = vmatprep.subr.mxu0 0.0
  %271 = vmatpush1.msra.mxu0 0.0
  %272 = vmatprep.subr.mxu0 0.0
  %273 = vmatpush1.msra.mxu0 0.0
  %274 = vmatprep.subr.mxu0 0.0
  %275 = vmatpush1.msra.mxu0 0.0
  %276 = vmatprep.subr.mxu0 0.0
  %277 = vmatpush1.msra.mxu0 0.0
  %278 = vmatprep.subr.mxu0 0.0
  %279 = vmatpush1.msra.mxu0 0.0
  %280 = vmatprep.subr.mxu0 0.0
  %281 = vmatpush1.msra.mxu0 0.0
  %282 = vmatprep.subr.mxu0 0.0
  %283 = vmatpush1.msra.mxu0 0.0
  %284 = vmatprep.subr.mxu0 0.0
  %285 = vmatpush1.msra.mxu0 0.0
  %286 = vmatprep.subr.mxu0 0.0
  %287 = vmatpush1.msra.mxu0 0.0
  %288 = vmatprep.subr.mxu0 0.0
  %289 = vmatpush1.msra.mxu0 0.0
  %290 = vmatprep.subr.mxu0 0.0
  %291 = vmatpush1.msra.mxu0 0.0
  %292 = vmatprep.subr.mxu0 0.0
  %293 = vmatpush1.msra.mxu0 0.0
  %294 = vmatprep.mubr.f32.mxu0 0.0
  %295 = vmatmul.mubr.f32.gmra.mrb[0].mxu0 %v219
  %v296 = vpop.f32.mrb[0].mxu0
  %v297 = vadd.f32 %v200, %v296
  %v298 = vpop.f32.mrb[0].mxu0
  %299 = vmatprep.mubr.f32.mxu0 0.0
  %300 = vmatmul.mubr.f32.gmra.mrb[0].mxu0 %v222
  %v301 = vpop.f32.mrb[0].mxu0
  %v302 = vadd.f32 %v205, %v301
  %v303 = vpop.f32.mrb[0].mxu0
  %304 = vmatprep.mubr.f32.mxu0 0.0
  %305 = vmatmul.mubr.f32.gmra.mrb[0].mxu0 %v225
  %v306 = vpop.f32.mrb[0].mxu0
  %v307 = vadd.f32 %v210, %v306
  %v308 = vpop.f32.mrb[0].mxu0
  %309 = vmatprep.mubr.f32.mxu0 0.0
  %310 = vmatmul.mubr.f32.gmra.mrb[0].mxu0 %v228
  %v311 = vpop.f32.mrb[0].mxu0
  %v312 = vadd.f32 %v215, %v311
  %v313 = vpop.f32.mrb[0].mxu0
  %314 = vdwg.mxu0
  %v315 = vmax.f32 %v297, 0.0
  %v316 = vmax.f32 %v302, 0.0
  %v317 = vmax.f32 %v307, 0.0
  %v318 = vmax.f32 %v312, 0.0
  %320 = vset.pattern.permute.xlu0 0
  %321 = vperm.xlu0 %320, %v36
  %v322 = vpop.permute.xlu0 %321
  %325 = vset.pattern.permute.xlu0 0
  %326 = vperm.xlu0 %325, %v37
  %v327 = vpop.permute.xlu0 %326
  %330 = vset.pattern.permute.xlu0 0
  %331 = vperm.xlu0 %330, %v38
  %v332 = vpop.permute.xlu0 %331
  %335 = vset.pattern.permute.xlu0 0
  %336 = vperm.xlu0 %335, %v39
  %v337 = vpop.permute.xlu0 %336
  %v340 = vsel %vm123, %v26, 0
  %v343 = vsel %vm123, %v27, 0
  %v346 = vsel %vm123, %v28, 0
  %v349 = vsel %vm123, %v29, 0
  %351 = vmatprep.subr.mxu0 0.0
  %352 = vmatpush1.msra.mxu0 %v315
  %353 = vmatprep.subr.mxu0 0.0
  %354 = vmatpush1.msra.mxu0 %v316
  %355 = vmatprep.subr.mxu0 0.0
  %356 = vmatpush1.msra.mxu0 %v317
  %357 = vmatprep.subr.mxu0 0.0
  %358 = vmatpush1.msra.mxu0 %v318
  %359 = vmatprep.subr.mxu0 0.0
  %360 = vmatpush1.msra.mxu0 0.0
  %361 = vmatprep.subr.mxu0 0.0
  %362 = vmatpush1.msra.mxu0 0.0
  %363 = vmatprep.subr.mxu0 0.0
  %364 = vmatpush1.msra.mxu0 0.0
  %365 = vmatprep.subr.mxu0 0.0
  %366 = vmatpush1.msra.mxu0 0.0
  %367 = vmatprep.subr.mxu0 0.0
  %368 = vmatpush1.msra.mxu0 0.0
  %369 = vmatprep.subr.mxu0 0.0
  %370 = vmatpush1.msra.mxu0 0.0
  %371 = vmatprep.subr.mxu0 0.0
  %372 = vmatpush1.msra.mxu0 0.0
  %373 = vmatprep.subr.mxu0 0.0
  %374 = vmatpush1.msra.mxu0 0.0
  %375 = vmatprep.subr.mxu0 0.0
  %376 = vmatpush1.msra.mxu0 0.0
  %377 = vmatprep.subr.mxu0 0.0
  %378 = vmatpush1.msra.mxu0 0.0
  %379 = vmatprep.subr.mxu0 0.0
  %380 = vmatpush1.msra.mxu0 0.0
  %381 = vmatprep.subr.mxu0 0.0
  %382 = vmatpush1.msra.mxu0 0.0
  %383 = vmatprep.subr.mxu0 0.0
  %384 = vmatpush1.msra.mxu0 0.0
  %385 = vmatprep.subr.mxu0 0.0
  %386 = vmatpush1.msra.mxu0 0.0
  %387 = vmatprep.subr.mxu0 0.0
  %388 = vmatpush1.msra.mxu0 0.0
  %389 = vmatprep.subr.mxu0 0.0
  %390 = vmatpush1.msra.mxu0 0.0
  %391 = vmatprep.subr.mxu0 0.0
  %392 = vmatpush1.msra.mxu0 0.0
  %393 = vmatprep.subr.mxu0 0.0
  %394 = vmatpush1.msra.mxu0 0.0
  %395 = vmatprep.subr.mxu0 0.0
  %396 = vmatpush1.msra.mxu0 0.0
  %397 = vmatprep.subr.mxu0 0.0
  %398 = vmatpush1.msra.mxu0 0.0
  %399 = vmatprep.subr.mxu0 0.0
  %400 = vmatpush1.msra.mxu0 0.0
  %401 = vmatprep.subr.mxu0 0.0
  %402 = vmatpush1.msra.mxu0 0.0
  %403 = vmatprep.subr.mxu0 0.0
  %404 = vmatpush1.msra.mxu0 0.0
  %405 = vmatprep.subr.mxu0 0.0
  %406 = vmatpush1.msra.mxu0 0.0
  %407 = vmatprep.subr.mxu0 0.0
  %408 = vmatpush1.msra.mxu0 0.0
  %409 = vmatprep.subr.mxu0 0.0
  %410 = vmatpush1.msra.mxu0 0.0
  %411 = vmatprep.subr.mxu0 0.0
  %412 = vmatpush1.msra.mxu0 0.0
  %413 = vmatprep.subr.mxu0 0.0
  %414 = vmatpush1.msra.mxu0 0.0
  %415 = vmatprep.mubr.f32.mxu0 0.0
  %416 = vmatmul.mubr.f32.gmra.mrb[0].mxu0 %v340
  %v417 = vpop.f32.mrb[0].mxu0
  %v418 = vadd.f32 %v322, %v417
  %v419 = vpop.f32.mrb[0].mxu0
  %420 = vmatprep.mubr.f32.mxu0 0.0
  %421 = vmatmul.mubr.f32.gmra.mrb[0].mxu0 %v343
  %v422 = vpop.f32.mrb[0].mxu0
  %v423 = vadd.f32 %v327, %v422
  %v424 = vpop.f32.mrb[0].mxu0
  %425 = vmatprep.mubr.f32.mxu0 0.0
  %426 = vmatmul.mubr.f32.gmra.mrb[0].mxu0 %v346
  %v427 = vpop.f32.mrb[0].mxu0
  %v428 = vadd.f32 %v332, %v427
  %v429 = vpop.f32.mrb[0].mxu0
  %430 = vmatprep.mubr.f32.mxu0 0.0
  %431 = vmatmul.mubr.f32.gmra.mrb[0].mxu0 %v349
  %v432 = vpop.f32.mrb[0].mxu0
  %v433 = vadd.f32 %v337, %v432
  %v434 = vpop.f32.mrb[0].mxu0
  %435 = vdwg.mxu0
  %v436 = vtanh.pop %v418
  %v437 = vtanh.pop %v423
  %v438 = vtanh.pop %v428
  %v439 = vtanh.pop %v433
  %441 = vrot.lane.b32.xlu0 %v437, 2
  %v442 = vpop.permute.xlu0 %441
  %445 = vrot.lane.b32.xlu0 %v438, 4
  %v446 = vpop.permute.xlu0 %445
  %449 = vrot.lane.b32.xlu0 %v439, 6
  %v450 = vpop.permute.xlu0 %449
  %vm452 = vcmask 15360
  %v453 = vsel %vm452, %v436, %v442
  %vm454 = vcmask 31744
  %v455 = vsel %vm454, %v453, %v446
  %vm456 = vcmask 48128
  %v457 = vsel %vm456, %v455, %v450
  %v459 = vsel %vm217, %v194, 0
  %461 = vmatprep.subr.mxu0 0.0
  %462 = vmatpush1.msra.mxu0 %v457
  %463 = vmatprep.subr.mxu0 0.0
  %464 = vmatpush1.msra.mxu0 0.0
  %465 = vmatprep.subr.mxu0 0.0
  %466 = vmatpush1.msra.mxu0 0.0
  %467 = vmatprep.subr.mxu0 0.0
  %468 = vmatpush1.msra.mxu0 0.0
  %469 = vmatprep.subr.mxu0 0.0
  %470 = vmatpush1.msra.mxu0 0.0
  %471 = vmatprep.subr.mxu0 0.0
  %472 = vmatpush1.msra.mxu0 0.0
  %473 = vmatprep.subr.mxu0 0.0
  %474 = vmatpush1.msra.mxu0 0.0
  %475 = vmatprep.subr.mxu0 0.0
  %476 = vmatpush1.msra.mxu0 0.0
  %477 = vmatprep.subr.mxu0 0.0
  %478 = vmatpush1.msra.mxu0 0.0
  %479 = vmatprep.subr.mxu0 0.0
  %480 = vmatpush1.msra.mxu0 0.0
  %481 = vmatprep.subr.mxu0 0.0
  %482 = vmatpush1.msra.mxu0 0.0
  %483 = vmatprep.subr.mxu0 0.0
  %484 = vmatpush1.msra.mxu0 0.0
  %485 = vmatprep.subr.mxu0 0.0
  %486 = vmatpush1.msra.mxu0 0.0
  %487 = vmatprep.subr.mxu0 0.0
  %488 = vmatpush1.msra.mxu0 0.0
  %489 = vmatprep.subr.mxu0 0.0
  %490 = vmatpush1.msra.mxu0 0.0
  %491 = vmatprep.subr.mxu0 0.0
  %492 = vmatpush1.msra.mxu0 0.0
  %493 = vmatprep.subr.mxu0 0.0
  %494 = vmatpush1.msra.mxu0 0.0
  %495 = vmatprep.subr.mxu0 0.0
  %496 = vmatpush1.msra.mxu0 0.0
  %497 = vmatprep.subr.mxu0 0.0
  %498 = vmatpush1.msra.mxu0 0.0
  %499 = vmatprep.subr.mxu0 0.0
  %500 = vmatpush1.msra.mxu0 0.0
  %501 = vmatprep.subr.mxu0 0.0
  %502 = vmatpush1.msra.mxu0 0.0
  %503 = vmatprep.subr.mxu0 0.0
  %504 = vmatpush1.msra.mxu0 0.0
  %505 = vmatprep.subr.mxu0 0.0
  %506 = vmatpush1.msra.mxu0 0.0
  %507 = vmatprep.subr.mxu0 0.0
  %508 = vmatpush1.msra.mxu0 0.0
  %509 = vmatprep.subr.mxu0 0.0
  %510 = vmatpush1.msra.mxu0 0.0
  %511 = vmatprep.subr.mxu0 0.0
  %512 = vmatpush1.msra.mxu0 0.0
  %513 = vmatprep.subr.mxu0 0.0
  %514 = vmatpush1.msra.mxu0 0.0
  %515 = vmatprep.subr.mxu0 0.0
  %516 = vmatpush1.msra.mxu0 0.0
  %517 = vmatprep.subr.mxu0 0.0
  %518 = vmatpush1.msra.mxu0 0.0
  %519 = vmatprep.subr.mxu0 0.0
  %520 = vmatpush1.msra.mxu0 0.0
  %521 = vmatprep.subr.mxu0 0.0
  %522 = vmatpush1.msra.mxu0 0.0
  %523 = vmatprep.subr.mxu0 0.0
  %524 = vmatpush1.msra.mxu0 0.0
  %525 = vmatprep.mubr.f32.mxu0 0.0
  %526 = vmatmul.mubr.f32.gmra.mrb[0].mxu0 %v459
  %v527 = vpop.f32.mrb[0].mxu0
  %v528 = vadd.f32 0.0, %v527
  %v529 = vpop.f32.mrb[0].mxu0
  %530 = vdwg.mxu0
  %vm531 = vcmask 58368
  %v532 = vsel %vm531, %v528, -inf
  %v533 = vrot.slane %v532, 4
  %v534 = vmax.f32 %v532, %v533
  %v535 = vrot.slane %v534, 2
  %v536 = vmax.f32 %v534, %v535
  %v537 = vrot.slane %v536, 1
  %v538 = vmax.f32 %v536, %v537
  %v539 = vsub.f32 %v528, %v538
  %v540 = vmul.f32 %v539, 1.442695
  %v541 = vpow.pop %v540
  %v542 = vsel %vm531, %v541, 0.0
  %v543 = vrot.slane %v542, 4
  %v544 = vadd.f32 %v542, %v543
  %v545 = vrot.slane %v544, 2
  %v546 = vadd.f32 %v544, %v545
  %v547 = vrot.slane %v546, 1
  %v548 = vadd.f32 %v546, %v547
  %v549 = vlog2.pop %v548
  %v550 = vmul.f32 %v549, 0.6931472
  %v551 = vsub.f32 %v539, %v550
  %552 = vst.msk [vmem:[%s3] sm:$0x3] %vm531, %v551
  // Predicated region
  $region14: #{observation_classifier_forward.1} parent=0 // pred_check
    _
  $region15: #{observation_classifier_forward.1} parent=0 // pred_check_branch
    %554 = sbr.rel (0) target = $region17
  $region16: #{observation_classifier_forward.1} parent=0 // pred_region
    _
  $region17: #{observation_classifier_forward.1} parent=0 // pred_fallthru
    _
  // Predicated region
  $region18: #{observation_classifier_forward.1} parent=0 // pred_check
    _
  $region19: #{observation_classifier_forward.1} parent=0 // pred_check_branch
    %556 = sbr.rel (0) target = $region21
  $region20: #{observation_classifier_forward.1} parent=0 // pred_region
    _
  $region21: #{observation_classifier_forward.1} parent=0 // pred_fallthru
    _

</llo_original>
